<compile_context>
chip_gen: v7x
topology: tpu7x:2x2x1
jax: 0.10.0
libtpu: 0.0.40
codegen_flags: <defaults>
</compile_context>

<pallas_src>
import jax
import jax.numpy as jnp
from jax.experimental import pallas as pl
from jax.experimental.pallas import tpu as pltpu

_LANE = 128
_TARGET_BLOCK_BYTES = 4 * 1024 * 1024    # ~4 MiB per block
_VMEM_LIMIT_BYTES = 48 * 1024 * 1024     # > default scoped limit, < v7x 64 MiB


def _swish_kernel(x_ref, o_ref):
    x = x_ref[...]
    # sigmoid lowers to EUP transcendentals; multiply stays on the VPU.
    o_ref[...] = x * jax.nn.sigmoid(x)


def _sublane_multiple(dtype) -> int:
    # Sub-32-bit dtypes pack along sublanes: f32 -> 8, bf16 -> 16, int8/fp8 -> 32.
    itemsize = jnp.dtype(dtype).itemsize
    return max(8, 32 // itemsize)


@jax.jit
def swish(x: jax.Array) -> jax.Array:
    """Elementwise Swish, matching `x * torch.sigmoid(x)` exactly."""
    orig_shape = x.shape
    dtype = x.dtype
    itemsize = jnp.dtype(dtype).itemsize
    sub = _sublane_multiple(dtype)

    n = x.size
    if n == 0:
        return x

    # Flatten to a lane-dense (rows, 128) slab; pad only if not lane-aligned.
    rows = pl.cdiv(n, _LANE)
    n_pad = rows * _LANE
    x_flat = jnp.ravel(x)
    padded = n_pad != n
    if padded:
        # swish(0) = 0, so zero padding is semantically inert.
        x_flat = jnp.pad(x_flat, (0, n_pad - n))
    x2d = x_flat.reshape(rows, _LANE)

    # Block sizing: ~4 MiB blocks, sublane-multiple aligned for the dtype.
    max_block_rows = _TARGET_BLOCK_BYTES // (_LANE * itemsize)
    max_block_rows = max(sub, (max_block_rows // sub) * sub)
    if rows <= max_block_rows:
        # Single full-extent block (exempt from the (sub, 128) divisibility rule).
        block_rows = rows
    else:
        block_rows = max_block_rows
    grid = (pl.cdiv(rows, block_rows),)  # ragged final block handled by Pallas

    out2d = pl.pallas_call(
        _swish_kernel,
        out_shape=jax.ShapeDtypeStruct((rows, _LANE), dtype),
        grid_spec=pltpu.PrefetchScalarGridSpec(
            num_scalar_prefetch=0,
            grid=grid,
            in_specs=[pl.BlockSpec((block_rows, _LANE), lambda i: (i, 0))],
            out_specs=pl.BlockSpec((block_rows, _LANE), lambda i: (i, 0)),
        ),
        compiler_params=pltpu.CompilerParams(
            dimension_semantics=("parallel",),
            vmem_limit_bytes=_VMEM_LIMIT_BYTES,
        ),
    )(x2d)

    out_flat = out2d.reshape(-1)
    if padded:
        out_flat = out_flat[:n]
    return out_flat.reshape(orig_shape)


if __name__ == "__main__":
    key = jax.random.PRNGKey(0)

    # NCHW input, as a PyTorch conv stack would feed this activation.
    x = jax.random.normal(key, (2, 4, 16, 16), dtype=jnp.float32)
    out = jax.block_until_ready(swish(x))
    ref = x * jax.nn.sigmoid(x)
    assert out.shape == x.shape and out.dtype == x.dtype
    assert jnp.allclose(out, ref, atol=1e-6, rtol=1e-6)

    # Awkward (non-lane-aligned) size exercises the pad/slice fallback path.
    x2 = jax.random.normal(jax.random.PRNGKey(1), (3, 5, 7, 11), dtype=jnp.float32)
    out2 = jax.block_until_ready(swish(x2))
    ref2 = x2 * jax.nn.sigmoid(x2)
    assert out2.shape == x2.shape and out2.dtype == x2.dtype
    assert jnp.allclose(out2, ref2, atol=1e-6, rtol=1e-6)

    print("KERNEL_OK")
</pallas_src>

<mosaic_0001>
module attributes {stable_mosaic.version = 11 : i64} {
  func.func @_swish_kernel(%arg0: i32, %arg1: memref<16x128xf32, #tpu.memory_space<vmem>>, %arg2: memref<16x128xf32, #tpu.memory_space<vmem>>) attributes {dimension_semantics = [#tpu.dimension_semantics<parallel>], iteration_bounds = array<i64: 1>, scalar_prefetch = 0 : i64, scratch_operands = 0 : i64, tpu.core_type = #tpu.core_type<tc>, window_params = [{transform_indices = @transform_0, window_bounds = array<i64: 16, 128>}, {transform_indices = @transform_1, window_bounds = array<i64: 16, 128>}]} {
    %c0 = arith.constant 0 : index
    %c0_0 = arith.constant 0 : index
    %0 = vector.load %arg1[%c0, %c0_0] : memref<16x128xf32, #tpu.memory_space<vmem>>, vector<16x128xf32>
    %1 = arith.negf %0 : vector<16x128xf32>
    %2 = math.exp %1 : vector<16x128xf32>
    %cst = arith.constant 1.000000e+00 : f32
    %3 = vector.broadcast %cst : f32 to vector<16x128xf32>
    %4 = arith.addf %3, %2 : vector<16x128xf32>
    %5 = arith.divf %3, %4 : vector<16x128xf32>
    %6 = arith.mulf %0, %5 : vector<16x128xf32>
    %c0_1 = arith.constant 0 : index
    %c0_2 = arith.constant 0 : index
    %7 = vector.load %arg2[%c0_1, %c0_2] : memref<16x128xf32, #tpu.memory_space<vmem>>, vector<16x128xf32>
    tpu.vector_store %arg2[%c0_1, %c0_2], %6 {strides = array<i32>} : memref<16x128xf32, #tpu.memory_space<vmem>>, vector<16x128xf32>,
    return
  }
  func.func @transform_0(%arg0: i32) -> (i32, i32) {
    %c0_i32 = arith.constant 0 : i32
    %c0_i32_0 = arith.constant 0 : i32
    return %arg0, %c0_i32 : i32, i32
  }
  func.func @transform_1(%arg0: i32) -> (i32, i32) {
    %c0_i32 = arith.constant 0 : i32
    %c0_i32_0 = arith.constant 0 : i32
    return %arg0, %c0_i32 : i32, i32
  }
}

</mosaic_0001>

<llo_original>
// kernel: swish.1
$region0: #{swish.1}
  #allocation0 [shape = 'u32[]', space=smem, size = 0x4, offset = 0x4, fixed_abs, tag = 'smem constant byte address 0x4 - core index']
  #allocation1 [shape = 'u32[144,128]{1,0:T(1,128)}', space=vmem, size = 0x12000, scoped, tag = 'internal scratch']
  %s0 = inlined_call_operand.vmem [shape: f32[16,128], index: 0, kind: input, shape index: {}]
  %s1 = inlined_call_operand.vmem [shape: f32[16,128], index: 1, kind: output, shape index: {}]
  %s2 = sld [smem:[#allocation0]]
  $region14: #{swish.1} parent=0
    _
  %s4 = ssub.s32 1, %s2
  %s5 = scalar_select 0, %s4, %s2
  // Predicated region
  $region2: #{swish.1} parent=0 // pred_check
    _
  $region3: #{swish.1} parent=0 // pred_check_branch
    %7 = sbr.rel (0) target = $region5
  $region4: #{swish.1} parent=0 // pred_region
    _
  $region5: #{swish.1} parent=0 // pred_fallthru
    _
  %v8 = vld [vmem:[%s0] sm:$0xff]
  %v9 = vld [vmem:[%s0 + $0x8] sm:$0xff]
  %v10 = vxor.u32 %v8, 2147483648
  %v11 = vxor.u32 %v9, 2147483648
  %v12 = vmul.f32 %v10, 1.442695
  %v13 = vpow.pop %v12
  %v14 = vmul.f32 %v11, 1.442695
  %v15 = vpow.pop %v14
  %v16 = vadd.f32 %v13, 1.0
  %v17 = vadd.f32 %v15, 1.0
  %v18 = vrcp.pop %v16
  %v19 = vmul.f32 1.0, %v18
  %v20 = vrcp.pop %v17
  %v21 = vmul.f32 1.0, %v20
  %v22 = vmul.f32 %v8, %v19
  %v23 = vmul.f32 %v9, %v21
  %24 = vst [vmem:[%s1] sm:$0xff] %v22
  %25 = vst [vmem:[%s1 + $0x8] sm:$0xff] %v23
  // Predicated region
  $region6: #{swish.1} parent=0 // pred_check
    _
  $region7: #{swish.1} parent=0 // pred_check_branch
    %27 = sbr.rel (0) target = $region9
  $region8: #{swish.1} parent=0 // pred_region
    _
  $region9: #{swish.1} parent=0 // pred_fallthru
    _
  // Predicated region
  $region10: #{swish.1} parent=0 // pred_check
    _
  $region11: #{swish.1} parent=0 // pred_check_branch
    %29 = sbr.rel (0) target = $region13
  $region12: #{swish.1} parent=0 // pred_region
    _
  $region13: #{swish.1} parent=0 // pred_fallthru
    _

</llo_original>
